<compile_context>
chip_gen: v5e
topology: v5e:2x2
jax: 0.10.0
libtpu: 0.0.40
codegen_flags: <defaults>
</compile_context>

<pallas_src>
import numpy as np
import jax
import jax.numpy as jnp
from jax import lax
from jax.experimental import pallas as pl
from jax.experimental.pallas import tpu as pltpu

NEG_SLOPE = 0.01   # nn.LeakyReLU default
BN_EPS = 1e-5      # nn.BatchNorm2d default
LANE = 128         # vreg / MXU lane width


def _cdiv(a, b):
    return -(-a // b)


# ----------------------------------------------------------------------------
# Fused kernel: conv stack + eiie_dense + eiie_output_with_w + Linear + Softmax
# ----------------------------------------------------------------------------
def make_fused_kernel(cfg, neg_slope=NEG_SLOPE):
    B, F, R, C = cfg["B"], cfg["F"], cfg["R"], cfg["C"]
    M = B * R
    NP1 = R + 1
    layers = cfg["layers"]                 # static list of per-layer block offsets
    wod_row, misc_row = cfg["wod_row"], cfg["misc_row"]
    sel_row, g_row, bl_row = cfg["sel_row"], cfg["g_row"], cfg["bl_row"]

    def leaky(z):
        return jnp.where(z > 0, z, neg_slope * z)

    def kernel(x_ref, lw_ref, w_ref, n_ref, out_ref):
        # --- layer-0 input chunks: per-feature [M, C] slabs built in-kernel from
        #     the raw NCHW input (static slices + 8-aligned sublane concat), so no
        #     standalone XLA transpose dispatch precedes this call.
        def feature_slab(f):
            parts = [x_ref[b, f] for b in range(B)]            # each [R, C]
            return parts[0] if B == 1 else jnp.concatenate(parts, axis=0)

        chunks = [feature_slab(f) for f in range(F)]            # F x [M, C] f32

        # --- conv stack + eiie_dense: each layer == chunked matmul + bias + leaky.
        #     Operands cast to bf16 (single MXU pass per 128x128 block), f32 accum.
        #     Padded lanes of every chunk stay exactly zero by construction.
        for lyr in layers:
            rows = lyr["rows"]
            bh = [h.astype(jnp.bfloat16) for h in chunks]
            new_chunks = []
            for oc, b_row in enumerate(lyr["bias_rows"]):
                acc = n_ref[b_row:b_row + 1, :]                  # [1,128] f32 bias row
                for ic, h in enumerate(bh):
                    off = lyr["offs"][ic][oc]
                    acc = acc + jnp.dot(h, w_ref[off:off + rows, :],
                                        preferred_element_type=jnp.float32)
                new_chunks.append(leaky(acc))                    # [M,128] f32
            chunks = new_chunks

        d = chunks[0]                                            # [M,128]; lanes >= Cd are 0

        # --- eiie_output_with_w: concat([dense, last_w]) + 1x1 conv + BN + leaky
        #     scores = leaky(<d, wod> + last_w * wol + bo)   (lane reduce on XLU)
        wod = n_ref[wod_row:wod_row + 1, :]                      # [1,128]
        misc = n_ref[misc_row:misc_row + 1, :]                   # [[wol, bo, 0, ...]]
        s = jnp.sum(d * wod, axis=1, keepdims=True)              # [M,1]
        scores = leaky(s + lw_ref[...] * misc[:, 0:1] + misc[:, 1:2])

        # --- softmax_voting: Linear(R+1, R+1) + Softmax(dim=1), fused.
        #     Zero cash column contributes only the bias; the [B*R] -> [B,.]
        #     un-flatten is a selector matmul (no sublane<->lane relayout).
        sel = n_ref[sel_row:sel_row + B, 0:M]                    # [B, M] block one-hot
        g = n_ref[g_row:g_row + M, :]                            # [M,128] tiled W[:,1:].T
        bl = n_ref[bl_row:bl_row + 1, :]                         # [1,128]
        logits = jnp.dot(sel, scores * g,
                         preferred_element_type=jnp.float32) + bl   # [B,128]
        lg = logits[:, 0:NP1]                                    # [B, R+1]
        mx = jnp.max(lg, axis=1, keepdims=True)
        e = jnp.exp(lg - mx)                                     # EUP
        out_ref[...] = e / jnp.sum(e, axis=1, keepdims=True)     # exact normalization

    return kernel


# ----------------------------------------------------------------------------
# One-time weight folding & packing (hoisted out of the per-forward path)
# ----------------------------------------------------------------------------
def _fold_bn(w, b, p):
    """Fold eval-mode BatchNorm into conv weight [Cout,Cin,1,K] / bias [Cout]."""
    s = p['gamma'] / np.sqrt(p['var'] + BN_EPS)
    t = p['beta'] - p['mean'] * s
    return w * s[:, None, None, None], b * s + t


class _Packer:
    """Stacks 2D blocks into one [rows, 128] slab with aligned row offsets."""

    def __init__(self, align):
        self.align = align
        self.blocks = []
        self.rows = 0

    def add(self, arr2d):
        a = np.asarray(arr2d, np.float32)
        assert a.ndim == 2 and a.shape[1] <= LANE
        off = self.rows
        self.blocks.append((off, a))
        self.rows += _cdiv(a.shape[0], self.align) * self.align
        return off

    def finalize(self, dtype):
        pack = np.zeros((max(self.rows, self.align), LANE), np.float32)
        for off, a in self.blocks:
            pack[off:off + a.shape[0], :a.shape[1]] = a
        return jnp.asarray(pack).astype(dtype)


def _band(w0, w1, width_in):
    """Block-banded matrix realizing a (1,2) conv as one matmul: [W*Cin,(W-1)*Cout]."""
    cin, cout = w0.shape
    wout = width_in - 1
    band = np.zeros((width_in * cin, wout * cout), np.float32)
    for w in range(wout):
        band[w * cin:(w + 1) * cin, w * cout:(w + 1) * cout] = w0
        band[(w + 1) * cin:(w + 2) * cin, w * cout:(w + 1) * cout] = w1
    return band


def pack_weights(params, feature_number, rows, columns, batch):
    """BN-fold + pack all weights.

    Returns (wide_pack[bf16, 128 lanes], narrow_pack[f32, 128 lanes], static cfg).
    Wide pack: 128x128 (or Cx128) matmul blocks (16-row-aligned for bf16 tiling).
    Narrow pack: bias / head / voting rows (8-row-aligned, f32).
    """
    p = jax.tree.map(np.asarray, params)
    F, R, C, B = feature_number, rows, columns, batch
    M = B * R
    assert M <= LANE and R + 1 <= LANE

    wide = _Packer(align=16)      # bf16 sublane tile
    nar = _Packer(align=8)        # f32 sublane tile
    layers_cfg = []
    flops = 0

    # --- conv layer 0: per-feature banded blocks (fused with NCHW->slab transform)
    width = C
    lp = p['conv'][0]
    wf, bf = _fold_bn(lp['w'], lp['b'], lp)                  # [Cout, F, 1, 2]
    cout = wf.shape[0]
    out_cols = (width - 1) * cout
    k_out = _cdiv(out_cols, LANE)
    offs = []
    for f in range(F):
        band = _band(wf[:, f, 0, 0][None, :], wf[:, f, 0, 1][None, :], width)
        offs.append([wide.add(band[:, oc * LANE:(oc + 1) * LANE]) for oc in range(k_out)])
        flops += 2 * M * width * k_out * LANE
    bias_full = np.tile(bf, width - 1)
    b_rows = [nar.add(bias_full[None, oc * LANE:(oc + 1) * LANE]) for oc in range(k_out)]
    layers_cfg.append(dict(rows=width, offs=offs, bias_rows=b_rows))
    prev_k, prev_cout = k_out, cout
    width -= 1

    # --- remaining conv layers: block-banded [prev_k*128, out_cols], 128x128 chunks
    for lp in p['conv'][1:]:
        wf, bf = _fold_bn(lp['w'], lp['b'], lp)              # [Cout, Cin, 1, 2]
        assert wf.shape[1] == prev_cout
        cout = wf.shape[0]
        band = _band(wf[:, :, 0, 0].T, wf[:, :, 0, 1].T, width)
        out_cols = band.shape[1]
        k_out = _cdiv(out_cols, LANE)
        full = np.zeros((prev_k * LANE, k_out * LANE), np.float32)
        full[:band.shape[0], :band.shape[1]] = band
        offs = [[wide.add(full[ic * LANE:(ic + 1) * LANE, oc * LANE:(oc + 1) * LANE])
                 for oc in range(k_out)] for ic in range(prev_k)]
        flops += 2 * M * prev_k * LANE * k_out * LANE
        bias_full = np.tile(bf, width - 1)
        b_rows = [nar.add(bias_full[None, oc * LANE:(oc + 1) * LANE]) for oc in range(k_out)]
        layers_cfg.append(dict(rows=LANE, offs=offs, bias_rows=b_rows))
        prev_k, prev_cout = k_out, cout
        width -= 1

    # --- eiie_dense: Conv2d kernel (1, width) == dense [width*Cc, Cd] matrix
    dn = p['dense']
    wf, bf = _fold_bn(dn['w'], dn['b'], dn)                  # [Cd, Cc, 1, width]
    cd, cc = wf.shape[0], wf.shape[1]
    assert cd <= LANE and cc == prev_cout and wf.shape[3] == width
    dflat = np.transpose(wf[:, :, 0, :], (2, 1, 0)).reshape(width * cc, cd)
    full = np.zeros((prev_k * LANE, cd), np.float32)
    full[:dflat.shape[0], :] = dflat
    offs = [[wide.add(full[ic * LANE:(ic + 1) * LANE, :])] for ic in range(prev_k)]
    flops += 2 * M * prev_k * LANE * LANE
    b_rows = [nar.add(bf[None, :])]
    layers_cfg.append(dict(rows=LANE, offs=offs, bias_rows=b_rows))

    # --- eiie_output_with_w (1x1 conv over concat([dense, last_w]) + BN + leaky)
    po = p['out']
    wf, bfo = _fold_bn(po['w'], po['b'], po)                 # [1, Cd+1, 1, 1]
    wvec = wf[0, :, 0, 0]
    wod_row = nar.add(wvec[None, :cd])
    misc_row = nar.add(np.array([[wvec[cd], bfo[0]]], np.float32))

    # --- softmax_voting: Linear(R+1, R+1); cash column of the input is zero.
    lin = p['lin']
    sel = np.kron(np.eye(B, dtype=np.float32), np.ones((1, R), np.float32))  # [B, M]
    g = np.tile(lin['w'][:, 1:].T, (B, 1))                                   # [M, R+1]
    sel_row = nar.add(sel)
    g_row = nar.add(g)
    bl_row = nar.add(lin['b'][None, :])
    flops += 2 * B * M * LANE + 4 * M * LANE

    wide_pack = wide.finalize(jnp.bfloat16)
    nar_pack = nar.finalize(jnp.float32)
    bytes_accessed = (B * F * R * C * 4 + M * 4 + wide_pack.size * 2
                      + nar_pack.size * 4 + B * (R + 1) * 4)

    cfg = dict(B=B, F=F, R=R, C=C, layers=layers_cfg,
               wod_row=wod_row, misc_row=misc_row,
               sel_row=sel_row, g_row=g_row, bl_row=bl_row,
               flops=int(flops), bytes_accessed=int(bytes_accessed))
    return wide_pack, nar_pack, cfg


# ----------------------------------------------------------------------------
# Forward builder: pallas_call is constructed ONCE and cached inside the closure
# ----------------------------------------------------------------------------
def build_forward(cfg):
    B, R = cfg["B"], cfg["R"]
    M = B * R
    call = pl.pallas_call(
        make_fused_kernel(cfg),
        out_shape=jax.ShapeDtypeStruct((B, R + 1), jnp.float32),
        in_specs=[pl.BlockSpec(memory_space=pltpu.MemorySpace.VMEM)] * 4,
        out_specs=pl.BlockSpec(memory_space=pltpu.MemorySpace.VMEM),
        cost_estimate=pl.CostEstimate(flops=cfg["flops"],
                                      transcendentals=B * (R + 1),
                                      bytes_accessed=cfg["bytes_accessed"]),
    )

    @jax.jit
    def fwd(x_nchw, last_w, wide_pack, nar_pack):
        # last_w [B,R] -> [M,1] is a pure row-major bitcast (no extra dispatch);
        # x is passed raw NCHW, the layout transform happens inside the kernel.
        return call(x_nchw, last_w.reshape(M, 1), wide_pack, nar_pack)

    return fwd


# ----------------------------------------------------------------------------
# Parameter init (deterministic, PyTorch-shaped)
# ----------------------------------------------------------------------------
def init_params(key, feature_number, rows, columns, conv_layer_outputs,
                eiie_dense_out_channels):
    keys = iter(jax.random.split(key, 64))

    def nrm(shape, scale=0.1):
        return scale * jax.random.normal(next(keys), shape, jnp.float32)

    def bn(c):
        return dict(gamma=1.0 + nrm((c,)), beta=nrm((c,)),
                    mean=nrm((c,)), var=1.0 + jnp.abs(nrm((c,))))

    params = {'conv': []}
    cin = feature_number
    for cout in conv_layer_outputs:
        params['conv'].append(dict(w=nrm((cout, cin, 1, 2)), b=nrm((cout,)), **bn(cout)))
        cin = cout
    wc = columns - len(conv_layer_outputs)     # width after the (1,2)-conv stack
    cd = eiie_dense_out_channels
    params['dense'] = dict(w=nrm((cd, cin, 1, wc)), b=nrm((cd,)), **bn(cd))
    params['out'] = dict(w=nrm((1, cd + 1, 1, 1)), b=nrm((1,)), **bn(1))
    params['lin'] = dict(w=nrm((rows + 1, rows + 1)), b=nrm((rows + 1,)))
    return params


# ----------------------------------------------------------------------------
# Pure-JAX reference (lax.conv, NCHW, f32) for correctness checking
# ----------------------------------------------------------------------------
def reference_forward(x, last_w, params):
    def bn(y, p):
        s = (p['gamma'] / jnp.sqrt(p['var'] + BN_EPS))[None, :, None, None]
        return (y - p['mean'][None, :, None, None]) * s + p['beta'][None, :, None, None]

    def conv(y, p):
        out = lax.conv_general_dilated(
            y, p['w'], (1, 1), 'VALID',
            dimension_numbers=('NCHW', 'OIHW', 'NCHW'),
            precision=lax.Precision.HIGHEST)
        return out + p['b'][None, :, None, None]

    def leaky(y):
        return jnp.where(y > 0, y, NEG_SLOPE * y)

    B, _, R, _ = x.shape
    h = x
    for p in params['conv']:
        h = leaky(bn(conv(h, p), p))
    h = leaky(bn(conv(h, params['dense']), params['dense']))      # [B, Cd, R, 1]
    w = last_w.reshape(B, 1, R, 1)
    cat = jnp.concatenate([h, w], axis=1)
    o = leaky(bn(conv(cat, params['out']), params['out']))        # [B, 1, R, 1]
    o = o.reshape(B, R)
    v = jnp.concatenate([jnp.zeros((B, 1), jnp.float32), o], axis=1)
    logits = v @ params['lin']['w'].T + params['lin']['b'][None, :]
    return jax.nn.softmax(logits, axis=1)


if __name__ == "__main__":
    feature_number, rows, columns = 3, 8, 16
    conv_layer_outputs = [8, 16]
    eiie_dense_out_channels = 16
    B = 2

    key = jax.random.PRNGKey(0)
    kp, kx, kw = jax.random.split(key, 3)
    params = init_params(kp, feature_number, rows, columns,
                         conv_layer_outputs, eiie_dense_out_channels)
    x = jax.random.normal(kx, (B, feature_number, rows, columns), jnp.float32)
    last_w = jax.nn.softmax(jax.random.normal(kw, (B, rows), jnp.float32), axis=1)

    # Weight folding / packing is done ONCE, outside the per-inference path.
    wide_pack, nar_pack, cfg = pack_weights(params, feature_number, rows, columns, B)

    fwd = build_forward(cfg)
    out = jax.block_until_ready(fwd(x, last_w, wide_pack, nar_pack))

    ref = reference_forward(x, last_w, params)
    assert out.shape == (B, rows + 1)
    # Matches the torch assert (exact f32 normalization in-kernel).
    assert bool(jnp.all(jnp.round(jnp.sum(out, axis=1)) == 1))
    # Tolerance is bf16-level: the conv/dense matmul chain runs with bf16
    # operands (f32 accumulation) per the perf review; head/voting stay f32.
    assert bool(jnp.allclose(out, ref, rtol=3e-2, atol=3e-3)), (out, ref)
    print("KERNEL_OK")
</pallas_src>

<mosaic_0001>
module attributes {stable_mosaic.version = 11 : i64} {
  func.func @kernel(%arg0: memref<2x3x8x16xf32, #tpu.memory_space<vmem>>, %arg1: memref<16x1xf32, #tpu.memory_space<vmem>>, %arg2: memref<560x128xbf16, #tpu.memory_space<vmem>>, %arg3: memref<80x128xf32, #tpu.memory_space<vmem>>, %arg4: memref<2x9xf32, #tpu.memory_space<vmem>>) attributes {dimension_semantics = [], scalar_prefetch = 0 : i64, scratch_operands = 0 : i64, tpu.core_type = #tpu.core_type<tc>} {
    %c0 = arith.constant 0 : index
    %c0_0 = arith.constant 0 : index
    %c0_1 = arith.constant 0 : index
    %c0_2 = arith.constant 0 : index
    %0 = vector.load %arg0[%c0, %c0_0, %c0_1, %c0_2] : memref<2x3x8x16xf32, #tpu.memory_space<vmem>>, vector<1x1x8x16xf32>
    %1 = vector.shape_cast %0 : vector<1x1x8x16xf32> to vector<8x16xf32>
    %c1 = arith.constant 1 : index
    %c0_3 = arith.constant 0 : index
    %c0_4 = arith.constant 0 : index
    %c0_5 = arith.constant 0 : index
    %2 = vector.load %arg0[%c1, %c0_3, %c0_4, %c0_5] : memref<2x3x8x16xf32, #tpu.memory_space<vmem>>, vector<1x1x8x16xf32>
    %3 = vector.shape_cast %2 : vector<1x1x8x16xf32> to vector<8x16xf32>
    %4 = tpu.concatenate %1, %3 in 0 : vector<8x16xf32>, vector<8x16xf32> -> vector<16x16xf32>
    %c0_6 = arith.constant 0 : index
    %c1_7 = arith.constant 1 : index
    %c0_8 = arith.constant 0 : index
    %c0_9 = arith.constant 0 : index
    %5 = vector.load %arg0[%c0_6, %c1_7, %c0_8, %c0_9] : memref<2x3x8x16xf32, #tpu.memory_space<vmem>>, vector<1x1x8x16xf32>
    %6 = vector.shape_cast %5 : vector<1x1x8x16xf32> to vector<8x16xf32>
    %c1_10 = arith.constant 1 : index
    %c1_11 = arith.constant 1 : index
    %c0_12 = arith.constant 0 : index
    %c0_13 = arith.constant 0 : index
    %7 = vector.load %arg0[%c1_10, %c1_11, %c0_12, %c0_13] : memref<2x3x8x16xf32, #tpu.memory_space<vmem>>, vector<1x1x8x16xf32>
    %8 = vector.shape_cast %7 : vector<1x1x8x16xf32> to vector<8x16xf32>
    %9 = tpu.concatenate %6, %8 in 0 : vector<8x16xf32>, vector<8x16xf32> -> vector<16x16xf32>
    %c0_14 = arith.constant 0 : index
    %c2 = arith.constant 2 : index
    %c0_15 = arith.constant 0 : index
    %c0_16 = arith.constant 0 : index
    %10 = vector.load %arg0[%c0_14, %c2, %c0_15, %c0_16] : memref<2x3x8x16xf32, #tpu.memory_space<vmem>>, vector<1x1x8x16xf32>
    %11 = vector.shape_cast %10 : vector<1x1x8x16xf32> to vector<8x16xf32>
    %c1_17 = arith.constant 1 : index
    %c2_18 = arith.constant 2 : index
    %c0_19 = arith.constant 0 : index
    %c0_20 = arith.constant 0 : index
    %12 = vector.load %arg0[%c1_17, %c2_18, %c0_19, %c0_20] : memref<2x3x8x16xf32, #tpu.memory_space<vmem>>, vector<1x1x8x16xf32>
    %13 = vector.shape_cast %12 : vector<1x1x8x16xf32> to vector<8x16xf32>
    %14 = tpu.concatenate %11, %13 in 0 : vector<8x16xf32>, vector<8x16xf32> -> vector<16x16xf32>
    %15 = arith.truncf %4 : vector<16x16xf32> to vector<16x16xbf16>
    %16 = arith.truncf %9 : vector<16x16xf32> to vector<16x16xbf16>
    %17 = arith.truncf %14 : vector<16x16xf32> to vector<16x16xbf16>
    %c0_21 = arith.constant 0 : index
    %c0_22 = arith.constant 0 : index
    %18 = vector.load %arg3[%c0_21, %c0_22] : memref<80x128xf32, #tpu.memory_space<vmem>>, vector<1x128xf32>
    %c0_23 = arith.constant 0 : index
    %c0_24 = arith.constant 0 : index
    %19 = vector.load %arg2[%c0_23, %c0_24] : memref<560x128xbf16, #tpu.memory_space<vmem>>, vector<16x128xbf16>
    %cst = arith.constant dense<0.000000e+00> : vector<16x128xf32>
    %20 = tpu.matmul %15, %19, %cst {dimension_numbers = #tpu.dot_dimension_numbers<[1], [0], [0], [1], [0, 0, 1, 1], [], []>} : vector<16x16xbf16>, vector<16x128xbf16>, vector<16x128xf32> -> vector<16x128xf32>
    %21 = vector.broadcast %18 : vector<1x128xf32> to vector<16x128xf32>
    %22 = arith.addf %21, %20 : vector<16x128xf32>
    %c16 = arith.constant 16 : index
    %c0_25 = arith.constant 0 : index
    %23 = vector.load %arg2[%c16, %c0_25] : memref<560x128xbf16, #tpu.memory_space<vmem>>, vector<16x128xbf16>
    %cst_26 = arith.constant dense<0.000000e+00> : vector<16x128xf32>
    %24 = tpu.matmul %16, %23, %cst_26 {dimension_numbers = #tpu.dot_dimension_numbers<[1], [0], [0], [1], [0, 0, 1, 1], [], []>} : vector<16x16xbf16>, vector<16x128xbf16>, vector<16x128xf32> -> vector<16x128xf32>
    %25 = arith.addf %22, %24 : vector<16x128xf32>
    %c32 = arith.constant 32 : index
    %c0_27 = arith.constant 0 : index
    %26 = vector.load %arg2[%c32, %c0_27] : memref<560x128xbf16, #tpu.memory_space<vmem>>, vector<16x128xbf16>
    %cst_28 = arith.constant dense<0.000000e+00> : vector<16x128xf32>
    %27 = tpu.matmul %17, %26, %cst_28 {dimension_numbers = #tpu.dot_dimension_numbers<[1], [0], [0], [1], [0, 0, 1, 1], [], []>} : vector<16x16xbf16>, vector<16x128xbf16>, vector<16x128xf32> -> vector<16x128xf32>
    %28 = arith.addf %25, %27 : vector<16x128xf32>
    %cst_29 = arith.constant 0.000000e+00 : f32
    %29 = vector.broadcast %cst_29 : f32 to vector<16x128xf32>
    %30 = arith.cmpf ogt, %28, %29 : vector<16x128xf32>
    %cst_30 = arith.constant 0.00999999977 : f32
    %31 = vector.broadcast %cst_30 : f32 to vector<16x128xf32>
    %32 = arith.mulf %31, %28 : vector<16x128xf32>
    %33 = arith.select %30, %28, %32 : vector<16x128xi1>, vector<16x128xf32>
    %34 = arith.truncf %33 : vector<16x128xf32> to vector<16x128xbf16>
    %c8 = arith.constant 8 : index
    %c0_31 = arith.constant 0 : index
    %35 = vector.load %arg3[%c8, %c0_31] : memref<80x128xf32, #tpu.memory_space<vmem>>, vector<1x128xf32>
    %c48 = arith.constant 48 : index
    %c0_32 = arith.constant 0 : index
    %36 = vector.load %arg2[%c48, %c0_32] : memref<560x128xbf16, #tpu.memory_space<vmem>>, vector<128x128xbf16>
    %cst_33 = arith.constant dense<0.000000e+00> : vector<16x128xf32>
    %37 = tpu.matmul %34, %36, %cst_33 {dimension_numbers = #tpu.dot_dimension_numbers<[1], [0], [0], [1], [0, 0, 1, 1], [], []>} : vector<16x128xbf16>, vector<128x128xbf16>, vector<16x128xf32> -> vector<16x128xf32>
    %38 = vector.broadcast %35 : vector<1x128xf32> to vector<16x128xf32>
    %39 = arith.addf %38, %37 : vector<16x128xf32>
    %cst_34 = arith.constant 0.000000e+00 : f32
    %40 = vector.broadcast %cst_34 : f32 to vector<16x128xf32>
    %41 = arith.cmpf ogt, %39, %40 : vector<16x128xf32>
    %cst_35 = arith.constant 0.00999999977 : f32
    %42 = vector.broadcast %cst_35 : f32 to vector<16x128xf32>
    %43 = arith.mulf %42, %39 : vector<16x128xf32>
    %44 = arith.select %41, %39, %43 : vector<16x128xi1>, vector<16x128xf32>
    %c16_36 = arith.constant 16 : index
    %c0_37 = arith.constant 0 : index
    %45 = vector.load %arg3[%c16_36, %c0_37] : memref<80x128xf32, #tpu.memory_space<vmem>>, vector<1x128xf32>
    %c176 = arith.constant 176 : index
    %c0_38 = arith.constant 0 : index
    %46 = vector.load %arg2[%c176, %c0_38] : memref<560x128xbf16, #tpu.memory_space<vmem>>, vector<128x128xbf16>
    %cst_39 = arith.constant dense<0.000000e+00> : vector<16x128xf32>
    %47 = tpu.matmul %34, %46, %cst_39 {dimension_numbers = #tpu.dot_dimension_numbers<[1], [0], [0], [1], [0, 0, 1, 1], [], []>} : vector<16x128xbf16>, vector<128x128xbf16>, vector<16x128xf32> -> vector<16x128xf32>
    %48 = vector.broadcast %45 : vector<1x128xf32> to vector<16x128xf32>
    %49 = arith.addf %48, %47 : vector<16x128xf32>
    %cst_40 = arith.constant 0.000000e+00 : f32
    %50 = vector.broadcast %cst_40 : f32 to vector<16x128xf32>
    %51 = arith.cmpf ogt, %49, %50 : vector<16x128xf32>
    %cst_41 = arith.constant 0.00999999977 : f32
    %52 = vector.broadcast %cst_41 : f32 to vector<16x128xf32>
    %53 = arith.mulf %52, %49 : vector<16x128xf32>
    %54 = arith.select %51, %49, %53 : vector<16x128xi1>, vector<16x128xf32>
    %55 = arith.truncf %44 : vector<16x128xf32> to vector<16x128xbf16>
    %56 = arith.truncf %54 : vector<16x128xf32> to vector<16x128xbf16>
    %c24 = arith.constant 24 : index
    %c0_42 = arith.constant 0 : index
    %57 = vector.load %arg3[%c24, %c0_42] : memref<80x128xf32, #tpu.memory_space<vmem>>, vector<1x128xf32>
    %c304 = arith.constant 304 : index
    %c0_43 = arith.constant 0 : index
    %58 = vector.load %arg2[%c304, %c0_43] : memref<560x128xbf16, #tpu.memory_space<vmem>>, vector<128x128xbf16>
    %cst_44 = arith.constant dense<0.000000e+00> : vector<16x128xf32>
    %59 = tpu.matmul %55, %58, %cst_44 {dimension_numbers = #tpu.dot_dimension_numbers<[1], [0], [0], [1], [0, 0, 1, 1], [], []>} : vector<16x128xbf16>, vector<128x128xbf16>, vector<16x128xf32> -> vector<16x128xf32>
    %60 = vector.broadcast %57 : vector<1x128xf32> to vector<16x128xf32>
    %61 = arith.addf %60, %59 : vector<16x128xf32>
    %c432 = arith.constant 432 : index
    %c0_45 = arith.constant 0 : index
    %62 = vector.load %arg2[%c432, %c0_45] : memref<560x128xbf16, #tpu.memory_space<vmem>>, vector<128x128xbf16>
    %cst_46 = arith.constant dense<0.000000e+00> : vector<16x128xf32>
    %63 = tpu.matmul %56, %62, %cst_46 {dimension_numbers = #tpu.dot_dimension_numbers<[1], [0], [0], [1], [0, 0, 1, 1], [], []>} : vector<16x128xbf16>, vector<128x128xbf16>, vector<16x128xf32> -> vector<16x128xf32>
    %64 = arith.addf %61, %63 : vector<16x128xf32>
    %cst_47 = arith.constant 0.000000e+00 : f32
    %65 = vector.broadcast %cst_47 : f32 to vector<16x128xf32>
    %66 = arith.cmpf ogt, %64, %65 : vector<16x128xf32>
    %cst_48 = arith.constant 0.00999999977 : f32
    %67 = vector.broadcast %cst_48 : f32 to vector<16x128xf32>
    %68 = arith.mulf %67, %64 : vector<16x128xf32>
    %69 = arith.select %66, %64, %68 : vector<16x128xi1>, vector<16x128xf32>
    %c32_49 = arith.constant 32 : index
    %c0_50 = arith.constant 0 : index
    %70 = vector.load %arg3[%c32_49, %c0_50] : memref<80x128xf32, #tpu.memory_space<vmem>>, vector<1x128xf32>
    %c40 = arith.constant 40 : index
    %c0_51 = arith.constant 0 : index
    %71 = vector.load %arg3[%c40, %c0_51] : memref<80x128xf32, #tpu.memory_space<vmem>>, vector<1x128xf32>
    %72 = vector.broadcast %70 : vector<1x128xf32> to vector<16x128xf32>
    %73 = arith.mulf %69, %72 : vector<16x128xf32>
    %cst_52 = arith.constant dense<0.000000e+00> : vector<16xf32>
    %74 = vector.multi_reduction <add>, %73, %cst_52 [1] : vector<16x128xf32> to vector<16xf32>
    %75 = vector.shape_cast %74 : vector<16xf32> to vector<16x1xf32>
    %c0_53 = arith.constant 0 : index
    %c0_54 = arith.constant 0 : index
    %76 = vector.load %arg1[%c0_53, %c0_54] : memref<16x1xf32, #tpu.memory_space<vmem>>, vector<16x1xf32>
    %77 = vector.extract_strided_slice %71 {offsets = [0, 0], sizes = [1, 1], strides = [1, 1]} : vector<1x128xf32> to vector<1x1xf32>
    %78 = vector.broadcast %77 : vector<1x1xf32> to vector<16x1xf32>
    %79 = arith.mulf %76, %78 : vector<16x1xf32>
    %80 = arith.addf %75, %79 : vector<16x1xf32>
    %81 = vector.extract_strided_slice %71 {offsets = [0, 1], sizes = [1, 1], strides = [1, 1]} : vector<1x128xf32> to vector<1x1xf32>
    %82 = vector.broadcast %81 : vector<1x1xf32> to vector<16x1xf32>
    %83 = arith.addf %80, %82 : vector<16x1xf32>
    %cst_55 = arith.constant 0.000000e+00 : f32
    %84 = vector.broadcast %cst_55 : f32 to vector<16x1xf32>
    %85 = arith.cmpf ogt, %83, %84 : vector<16x1xf32>
    %cst_56 = arith.constant 0.00999999977 : f32
    %86 = vector.broadcast %cst_56 : f32 to vector<16x1xf32>
    %87 = arith.mulf %86, %83 : vector<16x1xf32>
    %88 = arith.select %85, %83, %87 : vector<16x1xi1>, vector<16x1xf32>
    %c48_57 = arith.constant 48 : index
    %c0_58 = arith.constant 0 : index
    %89 = vector.load %arg3[%c48_57, %c0_58] : memref<80x128xf32, #tpu.memory_space<vmem>>, vector<2x16xf32>
    %c56 = arith.constant 56 : index
    %c0_59 = arith.constant 0 : index
    %90 = vector.load %arg3[%c56, %c0_59] : memref<80x128xf32, #tpu.memory_space<vmem>>, vector<16x128xf32>
    %c72 = arith.constant 72 : index
    %c0_60 = arith.constant 0 : index
    %91 = vector.load %arg3[%c72, %c0_60] : memref<80x128xf32, #tpu.memory_space<vmem>>, vector<1x128xf32>
    %92 = vector.broadcast %88 : vector<16x1xf32> to vector<16x128xf32>
    %93 = arith.mulf %92, %90 : vector<16x128xf32>
    %cst_61 = arith.constant dense<0.000000e+00> : vector<2x128xf32>
    %94 = tpu.matmul %89, %93, %cst_61 {dimension_numbers = #tpu.dot_dimension_numbers<[1], [0], [0], [1], [0, 0, 1, 1], [], []>} : vector<2x16xf32>, vector<16x128xf32>, vector<2x128xf32> -> vector<2x128xf32>
    %95 = vector.broadcast %91 : vector<1x128xf32> to vector<2x128xf32>
    %96 = arith.addf %94, %95 : vector<2x128xf32>
    %97 = vector.extract_strided_slice %96 {offsets = [0, 0], sizes = [2, 9], strides = [1, 1]} : vector<2x128xf32> to vector<2x9xf32>
    %cst_62 = arith.constant dense<0xFF800000> : vector<2xf32>
    %98 = vector.multi_reduction <maximumf>, %97, %cst_62 [1] : vector<2x9xf32> to vector<2xf32>
    %99 = vector.shape_cast %98 : vector<2xf32> to vector<2x1xf32>
    %100 = vector.broadcast %99 : vector<2x1xf32> to vector<2x9xf32>
    %101 = arith.subf %97, %100 : vector<2x9xf32>
    %102 = math.exp %101 : vector<2x9xf32>
    %cst_63 = arith.constant dense<0.000000e+00> : vector<2xf32>
    %103 = vector.multi_reduction <add>, %102, %cst_63 [1] : vector<2x9xf32> to vector<2xf32>
    %104 = vector.shape_cast %103 : vector<2xf32> to vector<2x1xf32>
    %105 = vector.broadcast %104 : vector<2x1xf32> to vector<2x9xf32>
    %106 = arith.divf %102, %105 : vector<2x9xf32>
    %c0_64 = arith.constant 0 : index
    %c0_65 = arith.constant 0 : index
    %107 = vector.load %arg4[%c0_64, %c0_65] : memref<2x9xf32, #tpu.memory_space<vmem>>, vector<2x9xf32>
    tpu.vector_store %arg4[%c0_64, %c0_65], %106 {strides = array<i32>} : memref<2x9xf32, #tpu.memory_space<vmem>>, vector<2x9xf32>,
    return
  }
}

</mosaic_0001>

<llo_original>
// kernel: fwd.1
$region0: #{fwd.1}
  #allocation0 [shape = 'u32[]', space=smem, size = 0x4, offset = 0x4, fixed_abs, tag = 'smem constant byte address 0x4 - core index']
  #allocation1 [shape = 'u32[72,128]{1,0:T(1,128)}', space=vmem, size = 0x9000, scoped, tag = 'internal scratch']
  %s0 = inlined_call_operand.hbm [shape: f32[2,3,8,16], index: 0, kind: input, shape index: {}]
  %s1 = inlined_call_operand.vmem [shape: f32[16,1], index: 1, kind: input, shape index: {}]
  %s2 = inlined_call_operand.hbm [shape: bf16[560,128], index: 2, kind: input, shape index: {}]
  %s3 = inlined_call_operand.hbm [shape: f32[80,128], index: 3, kind: input, shape index: {}]
  %s4 = inlined_call_operand.hbm [shape: f32[2,9], index: 4, kind: output, shape index: {}]
  %s5 = sld [smem:[#allocation0]]
  $region38: #{fwd.1} parent=0
    _
  %s7 = ssub.s32 1, %s5
  %s8 = scalar_select 0, %s7, %s5
  $region1: #{fwd.1} parent=0
    #allocation2 [shape = 'u8[24576]{0}', space=vmem, size = 0x6000, scoped, tag = 'input window, operand 0, single buffered']
    #allocation3 [shape = 's32[1]{0}', space=sflag, size = 0x4, scoped, tag = 'scoped memory for fwd.1']
    #allocation4 [shape = 's32[1]{0}', space=sflag, size = 0x4, scoped, tag = 'scoped memory for fwd.1']
    #allocation5 [shape = 'u8[143360]{0}', space=vmem, size = 0x23000, scoped, tag = 'input window, operand 2, single buffered']
    #allocation6 [shape = 's32[1]{0}', space=sflag, size = 0x4, scoped, tag = 'scoped memory for fwd.1']
    #allocation7 [shape = 'u8[40960]{0}', space=vmem, size = 0xa000, scoped, tag = 'input window, operand 3, single buffered']
    #allocation8 [shape = 'u8[1024]{0}', space=vmem, size = 0x400, scoped, tag = 'output window, operand 0, single buffered']
    %9 = vsyncpa [#allocation3], 0
    %10 = vsyncpa [#allocation6], 0
    %11 = vsyncpa [#allocation4], 0
    // Predicated region
    $region2: #{fwd.1} parent=1 // pred_check
      _
    $region3: #{fwd.1} parent=1 // pred_check_branch
      %13 = sbr.rel (0) target = $region5
    $region4: #{fwd.1} parent=1 // pred_region
      %15 = vsyncadd [#allocation3], 0
      %s16 = sshll.u32 %s0, 4
      %s17 = int_to_ptr.hbm [resolvable:$true] %s16
      %s18 = sshll.u32 [#allocation2], 4
      %s19 = int_to_ptr.vmem [resolvable:$true] %s18
      %24 = dma.hbm_to_vmem [thread:$0]  %s17, 768, %s19, [#allocation3], 128, 128, 8
    $region5: #{fwd.1} parent=1 // pred_fallthru
      _
    // Predicated region
    $region6: #{fwd.1} parent=1 // pred_check
      _
    $region7: #{fwd.1} parent=1 // pred_check_branch
      %26 = sbr.rel (0) target = $region9
    $region8: #{fwd.1} parent=1 // pred_region
      _
    $region9: #{fwd.1} parent=1 // pred_fallthru
      _
    // Predicated region
    $region10: #{fwd.1} parent=1 // pred_check
      _
    $region11: #{fwd.1} parent=1 // pred_check_branch
      %28 = sbr.rel (0) target = $region13
    $region12: #{fwd.1} parent=1 // pred_region
      %30 = vsyncadd [#allocation6], 0
      %s31 = sshll.u32 %s2, 4
      %s32 = int_to_ptr.hbm [resolvable:$true] %s31
      %s33 = sshll.u32 [#allocation5], 4
      %s34 = int_to_ptr.vmem [resolvable:$true] %s33
      %39 = dma.hbm_to_vmem [thread:$0]  %s32, 4480, %s34, [#allocation6], 64, 64, 4
    $region13: #{fwd.1} parent=1 // pred_fallthru
      _
    // Predicated region
    $region14: #{fwd.1} parent=1 // pred_check
      _
    $region15: #{fwd.1} parent=1 // pred_check_branch
      %41 = sbr.rel (0) target = $region17
    $region16: #{fwd.1} parent=1 // pred_region
      %43 = vsyncadd [#allocation6], 0
      %s44 = sshll.u32 %s3, 4
      %s45 = int_to_ptr.hbm [resolvable:$true] %s44
      %s46 = sshll.u32 [#allocation7], 4
      %s47 = int_to_ptr.vmem [resolvable:$true] %s46
      %52 = dma.hbm_to_vmem [thread:$0]  %s45, 1280, %s47, [#allocation6], 128, 128, 8
    $region17: #{fwd.1} parent=1 // pred_fallthru
      _
    // Predicated region
    $region18: #{fwd.1} parent=1 // pred_check
      _
    $region19: #{fwd.1} parent=1 // pred_check_branch
      %54 = sbr.rel (0) target = $region21
    $region20: #{fwd.1} parent=1 // pred_region
      %56 = dma.done [#allocation3], 768
    $region21: #{fwd.1} parent=1 // pred_fallthru
      _
    // Predicated region
    $region22: #{fwd.1} parent=1 // pred_check
      _
    $region23: #{fwd.1} parent=1 // pred_check_branch
      %58 = sbr.rel (0) target = $region25
    $region24: #{fwd.1} parent=1 // pred_region
      %60 = dma.done [#allocation6], 4480
    $region25: #{fwd.1} parent=1 // pred_fallthru
      _
    // Predicated region
    $region26: #{fwd.1} parent=1 // pred_check
      _
    $region27: #{fwd.1} parent=1 // pred_check_branch
      %62 = sbr.rel (0) target = $region29
    $region28: #{fwd.1} parent=1 // pred_region
      %64 = dma.done [#allocation6], 1280
    $region29: #{fwd.1} parent=1 // pred_fallthru
      _
    %v66 = vld [vmem:[#allocation2] sm:$0xff]
    %s67 = scalar_lea.vmem [#allocation2], 24
    %v68 = vld [vmem:[%s67] sm:$0xff]
    %s69 = scalar_lea.vmem [#allocation2], 8
    %v70 = vld [vmem:[%s69] sm:$0xff]
    %s71 = scalar_lea.vmem [#allocation2], 32
    %v72 = vld [vmem:[%s71] sm:$0xff]
    %s73 = scalar_lea.vmem [#allocation2], 16
    %v74 = vld [vmem:[%s73] sm:$0xff]
    %s75 = scalar_lea.vmem [#allocation2], 40
    %v76 = vld [vmem:[%s75] sm:$0xff]
    %v77 = vpack.c.bf16 %v68, %v66
    %v78 = vpack.c.bf16 %v72, %v70
    %v79 = vpack.c.bf16 %v76, %v74
    %v80 = vld [vmem:[#allocation7] sm:$0x1]
    %v81 = vld [vmem:[#allocation5] sm:$0xf]
    %v82 = vld [vmem:[#allocation5 + $0x4] sm:$0xf]
    %v85 = vunpack.c.l.b16 %v81
    %v86 = vunpack.c.l.b16 %v82
    %v87 = vpack.c.b16 %v86, %v85
    %vm89 = vcmask 130048
    %v91 = vsel %vm89, %v77, 0
    %93 = vmatpush.bf16.msra.mxu0 0
    %94 = vmatpush.bf16.msra.mxu0 0
    %95 = vmatpush.bf16.msra.mxu0 0
    %96 = vmatpush.bf16.msra.mxu0 0
    %97 = vmatpush.bf16.msra.mxu0 0
    %98 = vmatpush.bf16.msra.mxu0 0
    %99 = vmatpush.bf16.msra.mxu0 0
    %100 = vmatpush.bf16.msra.mxu0 %v87
    %101 = vmatmul.bf16.gmra.mxu0 %v91
    %v102 = vpop.f32.mrf.mxu0
    %v103 = vadd.f32 0.0, %v102
    %v104 = vpop.f32.mrf.mxu0
    %v105 = vadd.f32 0.0, %v104
    %106 = vdwg.mxu0
    %v107 = vperm.slane %v80, 0
    %v108 = vadd.f32 %v107, %v103
    %v109 = vadd.f32 %v107, %v105
    %v110 = vld [vmem:[#allocation5 + $0x8] sm:$0xf]
    %v111 = vld [vmem:[#allocation5 + $0xc] sm:$0xf]
    %v114 = vunpack.c.l.b16 %v110
    %v115 = vunpack.c.l.b16 %v111
    %v116 = vpack.c.b16 %v115, %v114
    %v119 = vsel %vm89, %v78, 0
    %121 = vmatpush.bf16.msra.mxu0 0
    %122 = vmatpush.bf16.msra.mxu0 0
    %123 = vmatpush.bf16.msra.mxu0 0
    %124 = vmatpush.bf16.msra.mxu0 0
    %125 = vmatpush.bf16.msra.mxu0 0
    %126 = vmatpush.bf16.msra.mxu0 0
    %127 = vmatpush.bf16.msra.mxu0 0
    %128 = vmatpush.bf16.msra.mxu0 %v116
    %129 = vmatmul.bf16.gmra.mxu0 %v119
    %v130 = vpop.f32.mrf.mxu0
    %v131 = vadd.f32 0.0, %v130
    %v132 = vpop.f32.mrf.mxu0
    %v133 = vadd.f32 0.0, %v132
    %134 = vdwg.mxu0
    %v135 = vadd.f32 %v108, %v131
    %v136 = vadd.f32 %v109, %v133
    %v137 = vld [vmem:[#allocation5 + $0x10] sm:$0xf]
    %v138 = vld [vmem:[#allocation5 + $0x14] sm:$0xf]
    %v141 = vunpack.c.l.b16 %v137
    %v142 = vunpack.c.l.b16 %v138
    %v143 = vpack.c.b16 %v142, %v141
    %v146 = vsel %vm89, %v79, 0
    %148 = vmatpush.bf16.msra.mxu0 0
    %149 = vmatpush.bf16.msra.mxu0 0
    %150 = vmatpush.bf16.msra.mxu0 0
    %151 = vmatpush.bf16.msra.mxu0 0
    %152 = vmatpush.bf16.msra.mxu0 0
    %153 = vmatpush.bf16.msra.mxu0 0
    %154 = vmatpush.bf16.msra.mxu0 0
    %155 = vmatpush.bf16.msra.mxu0 %v143
    %156 = vmatmul.bf16.gmra.mxu0 %v146
    %v157 = vpop.f32.mrf.mxu0
    %v158 = vadd.f32 0.0, %v157
    %v159 = vpop.f32.mrf.mxu0
    %v160 = vadd.f32 0.0, %v159
    %161 = vdwg.mxu0
    %v162 = vadd.f32 %v135, %v158
    %v163 = vadd.f32 %v136, %v160
    %vm164 = vcmp.gt.f32.partialorder %v162, 0.0
    %vm165 = vcmp.gt.f32.partialorder %v163, 0.0
    %v166 = vmul.f32 %v162, 0.01
    %v167 = vmul.f32 %v163, 0.01
    %v168 = vsel %vm164, %v162, %v166
    %v169 = vsel %vm165, %v163, %v167
    %v170 = vpack.c.bf16 %v169, %v168
    %v171 = vld [vmem:[#allocation7 + $0x8] sm:$0x1]
    %v172 = vld [vmem:[#allocation5 + $0x18] sm:$0xf]
    %v173 = vld [vmem:[#allocation5 + $0x1c] sm:$0xf]
    %v174 = vld [vmem:[#allocation5 + $0x20] sm:$0xf]
    %v175 = vld [vmem:[#allocation5 + $0x24] sm:$0xf]
    %v176 = vld [vmem:[#allocation5 + $0x28] sm:$0xf]
    %v177 = vld [vmem:[#allocation5 + $0x2c] sm:$0xf]
    %v178 = vld [vmem:[#allocation5 + $0x30] sm:$0xf]
    %v179 = vld [vmem:[#allocation5 + $0x34] sm:$0xf]
    %v180 = vld [vmem:[#allocation5 + $0x38] sm:$0xf]
    %v181 = vld [vmem:[#allocation5 + $0x3c] sm:$0xf]
    %v182 = vld [vmem:[#allocation5 + $0x40] sm:$0xf]
    %v183 = vld [vmem:[#allocation5 + $0x44] sm:$0xf]
    %v184 = vld [vmem:[#allocation5 + $0x48] sm:$0xf]
    %v185 = vld [vmem:[#allocation5 + $0x4c] sm:$0xf]
    %v186 = vld [vmem:[#allocation5 + $0x50] sm:$0xf]
    %v187 = vld [vmem:[#allocation5 + $0x54] sm:$0xf]
    %v204 = vunpack.c.l.b16 %v172
    %v205 = vunpack.c.l.b16 %v173
    %v206 = vunpack.c.l.b16 %v174
    %v207 = vunpack.c.l.b16 %v175
    %v208 = vunpack.c.l.b16 %v176
    %v209 = vunpack.c.l.b16 %v177
    %v210 = vunpack.c.l.b16 %v178
    %v211 = vunpack.c.l.b16 %v179
    %v212 = vunpack.c.l.b16 %v180
    %v213 = vunpack.c.l.b16 %v181
    %v214 = vunpack.c.l.b16 %v182
    %v215 = vunpack.c.l.b16 %v183
    %v216 = vunpack.c.l.b16 %v184
    %v217 = vunpack.c.l.b16 %v185
    %v218 = vunpack.c.l.b16 %v186
    %v219 = vunpack.c.l.b16 %v187
    %v220 = vpack.c.b16 %v205, %v204
    %v221 = vpack.c.b16 %v207, %v206
    %v222 = vpack.c.b16 %v209, %v208
    %v223 = vpack.c.b16 %v211, %v210
    %v224 = vpack.c.b16 %v213, %v212
    %v225 = vpack.c.b16 %v215, %v214
    %v226 = vpack.c.b16 %v217, %v216
    %v227 = vpack.c.b16 %v219, %v218
    %236 = vmatpush.bf16.msra.mxu0 %v227
    %237 = vmatpush.bf16.msra.mxu0 %v226
    %238 = vmatpush.bf16.msra.mxu0 %v225
    %239 = vmatpush.bf16.msra.mxu0 %v224
    %240 = vmatpush.bf16.msra.mxu0 %v223
    %241 = vmatpush.bf16.msra.mxu0 %v222
    %242 = vmatpush.bf16.msra.mxu0 %v221
    %243 = vmatpush.bf16.msra.mxu0 %v220
    %244 = vmatmul.bf16.gmra.mxu0 %v170
    %v245 = vpop.f32.mrf.mxu0
    %v246 = vadd.f32 0.0, %v245
    %v247 = vpop.f32.mrf.mxu0
    %v248 = vadd.f32 0.0, %v247
    %249 = vdwg.mxu0
    %v250 = vperm.slane %v171, 0
    %v251 = vadd.f32 %v250, %v246
    %v252 = vadd.f32 %v250, %v248
    %vm253 = vcmp.gt.f32.partialorder %v251, 0.0
    %vm254 = vcmp.gt.f32.partialorder %v252, 0.0
    %v255 = vmul.f32 %v251, 0.01
    %v256 = vmul.f32 %v252, 0.01
    %v257 = vsel %vm253, %v251, %v255
    %v258 = vsel %vm254, %v252, %v256
    %v259 = vld [vmem:[#allocation7 + $0x10] sm:$0x1]
    %v260 = vld [vmem:[#allocation5 + $0x58] sm:$0xf]
    %v261 = vld [vmem:[#allocation5 + $0x5c] sm:$0xf]
    %v262 = vld [vmem:[#allocation5 + $0x60] sm:$0xf]
    %v263 = vld [vmem:[#allocation5 + $0x64] sm:$0xf]
    %v264 = vld [vmem:[#allocation5 + $0x68] sm:$0xf]
    %v265 = vld [vmem:[#allocation5 + $0x6c] sm:$0xf]
    %v266 = vld [vmem:[#allocation5 + $0x70] sm:$0xf]
    %v267 = vld [vmem:[#allocation5 + $0x74] sm:$0xf]
    %v268 = vld [vmem:[#allocation5 + $0x78] sm:$0xf]
    %v269 = vld [vmem:[#allocation5 + $0x7c] sm:$0xf]
    %v270 = vld [vmem:[#allocation5 + $0x80] sm:$0xf]
    %v271 = vld [vmem:[#allocation5 + $0x84] sm:$0xf]
    %v272 = vld [vmem:[#allocation5 + $0x88] sm:$0xf]
    %v273 = vld [vmem:[#allocation5 + $0x8c] sm:$0xf]
    %v274 = vld [vmem:[#allocation5 + $0x90] sm:$0xf]
    %v275 = vld [vmem:[#allocation5 + $0x94] sm:$0xf]
    %v292 = vunpack.c.l.b16 %v260
    %v293 = vunpack.c.l.b16 %v261
    %v294 = vunpack.c.l.b16 %v262
    %v295 = vunpack.c.l.b16 %v263
    %v296 = vunpack.c.l.b16 %v264
    %v297 = vunpack.c.l.b16 %v265
    %v298 = vunpack.c.l.b16 %v266
    %v299 = vunpack.c.l.b16 %v267
    %v300 = vunpack.c.l.b16 %v268
    %v301 = vunpack.c.l.b16 %v269
    %v302 = vunpack.c.l.b16 %v270
    %v303 = vunpack.c.l.b16 %v271
    %v304 = vunpack.c.l.b16 %v272
    %v305 = vunpack.c.l.b16 %v273
    %v306 = vunpack.c.l.b16 %v274
    %v307 = vunpack.c.l.b16 %v275
    %v308 = vpack.c.b16 %v293, %v292
    %v309 = vpack.c.b16 %v295, %v294
    %v310 = vpack.c.b16 %v297, %v296
    %v311 = vpack.c.b16 %v299, %v298
    %v312 = vpack.c.b16 %v301, %v300
    %v313 = vpack.c.b16 %v303, %v302
    %v314 = vpack.c.b16 %v305, %v304
    %v315 = vpack.c.b16 %v307, %v306
    %324 = vmatpush.bf16.msra.mxu0 %v315
    %325 = vmatpush.bf16.msra.mxu0 %v314
    %326 = vmatpush.bf16.msra.mxu0 %v313
    %327 = vmatpush.bf16.msra.mxu0 %v312
    %328 = vmatpush.bf16.msra.mxu0 %v311
    %329 = vmatpush.bf16.msra.mxu0 %v310
    %330 = vmatpush.bf16.msra.mxu0 %v309
    %331 = vmatpush.bf16.msra.mxu0 %v308
    %332 = vmatmul.bf16.gmra.mxu0 %v170
    %v333 = vpop.f32.mrf.mxu0
    %v334 = vadd.f32 0.0, %v333
    %v335 = vpop.f32.mrf.mxu0
    %v336 = vadd.f32 0.0, %v335
    %337 = vdwg.mxu0
    %v338 = vperm.slane %v259, 0
    %v339 = vadd.f32 %v338, %v334
    %v340 = vadd.f32 %v338, %v336
    %vm341 = vcmp.gt.f32.partialorder %v339, 0.0
    %vm342 = vcmp.gt.f32.partialorder %v340, 0.0
    %v343 = vmul.f32 %v339, 0.01
    %v344 = vmul.f32 %v340, 0.01
    %v345 = vsel %vm341, %v339, %v343
    %v346 = vsel %vm342, %v340, %v344
    %v347 = vpack.c.bf16 %v258, %v257
    %v348 = vpack.c.bf16 %v346, %v345
    %v349 = vld [vmem:[#allocation7 + $0x18] sm:$0x1]
    %v350 = vld [vmem:[#allocation5 + $0x98] sm:$0xf]
    %v351 = vld [vmem:[#allocation5 + $0x9c] sm:$0xf]
    %v352 = vld [vmem:[#allocation5 + $0xa0] sm:$0xf]
    %v353 = vld [vmem:[#allocation5 + $0xa4] sm:$0xf]
    %v354 = vld [vmem:[#allocation5 + $0xa8] sm:$0xf]
    %v355 = vld [vmem:[#allocation5 + $0xac] sm:$0xf]
    %v356 = vld [vmem:[#allocation5 + $0xb0] sm:$0xf]
    %v357 = vld [vmem:[#allocation5 + $0xb4] sm:$0xf]
    %v358 = vld [vmem:[#allocation5 + $0xb8] sm:$0xf]
    %v359 = vld [vmem:[#allocation5 + $0xbc] sm:$0xf]
    %v360 = vld [vmem:[#allocation5 + $0xc0] sm:$0xf]
    %v361 = vld [vmem:[#allocation5 + $0xc4] sm:$0xf]
    %v362 = vld [vmem:[#allocation5 + $0xc8] sm:$0xf]
    %v363 = vld [vmem:[#allocation5 + $0xcc] sm:$0xf]
    %v364 = vld [vmem:[#allocation5 + $0xd0] sm:$0xf]
    %v365 = vld [vmem:[#allocation5 + $0xd4] sm:$0xf]
    %v382 = vunpack.c.l.b16 %v350
    %v383 = vunpack.c.l.b16 %v351
    %v384 = vunpack.c.l.b16 %v352
    %v385 = vunpack.c.l.b16 %v353
    %v386 = vunpack.c.l.b16 %v354
    %v387 = vunpack.c.l.b16 %v355
    %v388 = vunpack.c.l.b16 %v356
    %v389 = vunpack.c.l.b16 %v357
    %v390 = vunpack.c.l.b16 %v358
    %v391 = vunpack.c.l.b16 %v359
    %v392 = vunpack.c.l.b16 %v360
    %v393 = vunpack.c.l.b16 %v361
    %v394 = vunpack.c.l.b16 %v362
    %v395 = vunpack.c.l.b16 %v363
    %v396 = vunpack.c.l.b16 %v364
    %v397 = vunpack.c.l.b16 %v365
    %v398 = vpack.c.b16 %v383, %v382
    %v399 = vpack.c.b16 %v385, %v384
    %v400 = vpack.c.b16 %v387, %v386
    %v401 = vpack.c.b16 %v389, %v388
    %v402 = vpack.c.b16 %v391, %v390
    %v403 = vpack.c.b16 %v393, %v392
    %v404 = vpack.c.b16 %v395, %v394
    %v405 = vpack.c.b16 %v397, %v396
    %414 = vmatpush.bf16.msra.mxu0 %v405
    %415 = vmatpush.bf16.msra.mxu0 %v404
    %416 = vmatpush.bf16.msra.mxu0 %v403
    %417 = vmatpush.bf16.msra.mxu0 %v402
    %418 = vmatpush.bf16.msra.mxu0 %v401
    %419 = vmatpush.bf16.msra.mxu0 %v400
    %420 = vmatpush.bf16.msra.mxu0 %v399
    %421 = vmatpush.bf16.msra.mxu0 %v398
    %422 = vmatmul.bf16.gmra.mxu0 %v347
    %v423 = vpop.f32.mrf.mxu0
    %v424 = vadd.f32 0.0, %v423
    %v425 = vpop.f32.mrf.mxu0
    %v426 = vadd.f32 0.0, %v425
    %427 = vdwg.mxu0
    %v428 = vperm.slane %v349, 0
    %v429 = vadd.f32 %v428, %v424
    %v430 = vadd.f32 %v428, %v426
    %v431 = vld [vmem:[#allocation5 + $0xd8] sm:$0xf]
    %v432 = vld [vmem:[#allocation5 + $0xdc] sm:$0xf]
    %v433 = vld [vmem:[#allocation5 + $0xe0] sm:$0xf]
    %v434 = vld [vmem:[#allocation5 + $0xe4] sm:$0xf]
    %v435 = vld [vmem:[#allocation5 + $0xe8] sm:$0xf]
    %v436 = vld [vmem:[#allocation5 + $0xec] sm:$0xf]
    %v437 = vld [vmem:[#allocation5 + $0xf0] sm:$0xf]
    %v438 = vld [vmem:[#allocation5 + $0xf4] sm:$0xf]
    %v439 = vld [vmem:[#allocation5 + $0xf8] sm:$0xf]
    %v440 = vld [vmem:[#allocation5 + $0xfc] sm:$0xf]
    %v441 = vld [vmem:[#allocation5 + $0x100] sm:$0xf]
    %v442 = vld [vmem:[#allocation5 + $0x104] sm:$0xf]
    %v443 = vld [vmem:[#allocation5 + $0x108] sm:$0xf]
    %v444 = vld [vmem:[#allocation5 + $0x10c] sm:$0xf]
    %v445 = vld [vmem:[#allocation5 + $0x110] sm:$0xf]
    %v446 = vld [vmem:[#allocation5 + $0x114] sm:$0xf]
    %v463 = vunpack.c.l.b16 %v431
    %v464 = vunpack.c.l.b16 %v432
    %v465 = vunpack.c.l.b16 %v433
    %v466 = vunpack.c.l.b16 %v434
    %v467 = vunpack.c.l.b16 %v435
    %v468 = vunpack.c.l.b16 %v436
    %v469 = vunpack.c.l.b16 %v437
    %v470 = vunpack.c.l.b16 %v438
    %v471 = vunpack.c.l.b16 %v439
    %v472 = vunpack.c.l.b16 %v440
    %v473 = vunpack.c.l.b16 %v441
    %v474 = vunpack.c.l.b16 %v442
    %v475 = vunpack.c.l.b16 %v443
    %v476 = vunpack.c.l.b16 %v444
    %v477 = vunpack.c.l.b16 %v445
    %v478 = vunpack.c.l.b16 %v446
    %v479 = vpack.c.b16 %v464, %v463
    %v480 = vpack.c.b16 %v466, %v465
    %v481 = vpack.c.b16 %v468, %v467
    %v482 = vpack.c.b16 %v470, %v469
    %v483 = vpack.c.b16 %v472, %v471
    %v484 = vpack.c.b16 %v474, %v473
    %v485 = vpack.c.b16 %v476, %v475
    %v486 = vpack.c.b16 %v478, %v477
    %495 = vmatpush.bf16.msra.mxu0 %v486
    %496 = vmatpush.bf16.msra.mxu0 %v485
    %497 = vmatpush.bf16.msra.mxu0 %v484
    %498 = vmatpush.bf16.msra.mxu0 %v483
    %499 = vmatpush.bf16.msra.mxu0 %v482
    %500 = vmatpush.bf16.msra.mxu0 %v481
    %501 = vmatpush.bf16.msra.mxu0 %v480
    %502 = vmatpush.bf16.msra.mxu0 %v479
    %503 = vmatmul.bf16.gmra.mxu0 %v348
    %v504 = vpop.f32.mrf.mxu0
    %v505 = vadd.f32 0.0, %v504
    %v506 = vpop.f32.mrf.mxu0
    %v507 = vadd.f32 0.0, %v506
    %508 = vdwg.mxu0
    %v509 = vadd.f32 %v429, %v505
    %v510 = vadd.f32 %v430, %v507
    %vm511 = vcmp.gt.f32.partialorder %v509, 0.0
    %vm512 = vcmp.gt.f32.partialorder %v510, 0.0
    %v513 = vmul.f32 %v509, 0.01
    %v514 = vmul.f32 %v510, 0.01
    %v515 = vsel %vm511, %v509, %v513
    %v516 = vsel %vm512, %v510, %v514
    %v517 = vld [vmem:[#allocation7 + $0x20] sm:$0x1]
    %v518 = vld [vmem:[#allocation7 + $0x28] sm:$0x1]
    %v519 = vperm.slane %v517, 0
    %v520 = vmul.f32 %v515, %v519
    %v521 = vmul.f32 %v516, %v519
    %522 = vadd.xlane.f32.xlu0 %v520
    %v523 = vpop.xlane.xlu0 %522
    %524 = vadd.xlane.f32.xlu0 %v521
    %v525 = vpop.xlane.xlu0 %524
    %v526 = vld [vmem:[%s1] sm:$0xff]
    %v527 = vld [vmem:[%s1 + $0x8] sm:$0xff]
    %v528 = vperm.slane %v518, 0
    %v529 = vmul.f32 %v526, %v528
    %v530 = vmul.f32 %v527, %v528
    %v531 = vadd.f32 %v523, %v529
    %v532 = vadd.f32 %v525, %v530
    %534 = vrot.lane.b32.xlu0 %v528, 127
    %v535 = vpop.permute.xlu0 %534
    %v537 = vadd.f32 %v531, %v535
    %v538 = vadd.f32 %v532, %v535
    %vm539 = vcmp.gt.f32.partialorder %v537, 0.0
    %vm540 = vcmp.gt.f32.partialorder %v538, 0.0
    %v541 = vmul.f32 %v537, 0.01
    %v542 = vmul.f32 %v538, 0.01
    %v543 = vsel %vm539, %v537, %v541
    %v544 = vsel %vm540, %v538, %v542
    %v545 = vld [vmem:[#allocation7 + $0x30] sm:$0x3]
    %v546 = vld [vmem:[#allocation7 + $0x38] sm:$0xff]
    %v547 = vld [vmem:[#allocation7 + $0x40] sm:$0xff]
    %v548 = vld [vmem:[#allocation7 + $0x48] sm:$0x1]
    %550 = vset.pattern.permute.xlu0 0
    %551 = vperm.xlu0 %550, %v543
    %v552 = vpop.permute.xlu0 %551
    %555 = vset.pattern.permute.xlu0 0
    %556 = vperm.xlu0 %555, %v544
    %v557 = vpop.permute.xlu0 %556
    %v559 = vmul.f32 %v552, %v546
    %v560 = vmul.f32 %v557, %v547
    %v561 = vperm.slane %v548, 0
    %v563 = vsel %vm89, %v545, 0
    %565 = vmatpush.msra.mxu0 0.0
    %566 = vmatpush.msra.mxu0 0.0
    %567 = vmatpush.msra.mxu0 0.0
    %568 = vmatpush.msra.mxu0 0.0
    %569 = vmatpush.msra.mxu0 0.0
    %570 = vmatpush.msra.mxu0 0.0
    %571 = vmatpush.msra.mxu0 0.0
    %572 = vmatpush.msra.mxu0 0.0
    %573 = vmatpush.msra.mxu0 0.0
    %574 = vmatpush.msra.mxu0 0.0
    %575 = vmatpush.msra.mxu0 0.0
    %576 = vmatpush.msra.mxu0 0.0
    %577 = vmatpush.msra.mxu0 0.0
    %578 = vmatpush.msra.mxu0 0.0
    %579 = vmatpush.msra.mxu0 %v560
    %580 = vmatpush.msra.mxu0 %v559
    %581 = vmatmul.f32.gmra.mxu0 %v563
    %v582 = vpop.f32.mrf.mxu0
    %v583 = vadd.f32 %v561, %v582
    %584 = vdwg.mxu0
    %vm585 = vcmask 66560
    %v586 = vsel %vm585, %v583, -inf
    %587 = vmax.xlane.f32.xlu0 %v586
    %v588 = vpop.xlane.xlu0 %587
    %v589 = vsub.f32 %v583, %v588
    %v590 = vmul.f32 %v589, 1.442695
    %v591 = vpow.pop %v590
    %v592 = vsel %vm585, %v591, 0.0
    %593 = vadd.xlane.f32.xlu0 %v592
    %v594 = vpop.xlane.xlu0 %593
    %v595 = vrcp.pop %v594
    %v596 = vmul.f32 %v594, %v595
    %v597 = vsub.f32 1.0, %v596
    %v598 = vmul.f32 %v595, %v597
    %v599 = vadd.f32 %v595, %v598
    %vm600 = vweird.f32 %v594
    %vm601 = vweird.f32 %v595
    %vm602 = vmor %vm600, %vm601
    %v603 = vsel %vm602, %v595, %v599
    %v604 = vand.u32 2147483647, %v594
    %vm605 = vcmp.eq.f32.partialorder %v604, 8.507059e+37
    %v606 = vand.u32 %v594, 2147483648
    %v607 = vor.u32 1.1754944e-38, %v606
    %v608 = vsel %vm605, %v607, %v603
    %v609 = vmul.f32 %v591, %v608
    %610 = vst.msk [vmem:[#allocation8] sm:$0x3] %vm585, %v609
    // Predicated region
    $region30: #{fwd.1} parent=1 // pred_check
      _
    $region31: #{fwd.1} parent=1 // pred_check_branch
      %612 = sbr.rel (0) target = $region33
    $region32: #{fwd.1} parent=1 // pred_region
      %614 = vsyncadd [#allocation4], 0
      %s616 = sshll.u32 [#allocation8], 4
      %s617 = int_to_ptr.vmem [resolvable:$true] %s616
      %s618 = sshll.u32 %s4, 4
      %s619 = int_to_ptr.hbm [resolvable:$true] %s618
      %621 = dma.vmem_to_hbm [thread:$0]  %s617, 32, %s619, [#allocation4]
    $region33: #{fwd.1} parent=1 // pred_fallthru
      _
    // Predicated region
    $region34: #{fwd.1} parent=1 // pred_check
      _
    $region35: #{fwd.1} parent=1 // pred_check_branch
      %623 = sbr.rel (0) target = $region37
    $region36: #{fwd.1} parent=1 // pred_region
      %625 = dma.done [#allocation4], 32
    $region37: #{fwd.1} parent=1 // pred_fallthru
      _
    %626 = vsyncpa [#allocation3], 1
    %627 = vsyncpa [#allocation6], 1
    %628 = vsyncpa [#allocation4], 1

</llo_original>
